<compile_context>
chip_gen: v7x
topology: tpu7x:2x2x1
jax: 0.10.0
libtpu: 0.0.40
codegen_flags: <defaults>
</compile_context>

<pallas_src>
import jax
import jax.numpy as jnp
import numpy as np
from jax.experimental import pallas as pl
from jax.experimental.pallas import tpu as pltpu

_ROW_MULT = 32                      # block row multiple (covers f32/bf16/int8 sublane packing)
_TARGET_BLOCK_BYTES = 4 * 1024 * 1024   # ~4 MiB per mel input block (x2 inputs x2 buffers = 16 MiB)
_VMEM_LIMIT_BYTES = 32 * 1024 * 1024    # > v5e 16 MiB default scoped limit, < v7x 64 MiB physical


def _round_up(x, m):
    return ((x + m - 1) // m) * m


def _make_fused_kernel(num_aux, log1p_flags, tile_rows, total_rows, mel_cols, needs_mask):
    """Kernel factory: mel SSE streamed over the tile axis + fused tiny aux SSEs."""

    def kernel(*refs):
        mel_p_ref = refs[0]
        mel_t_ref = refs[1]
        aux_refs = refs[2:2 + 2 * num_aux]
        out_ref = refs[2 + 2 * num_aux]          # SMEM (1, 1 + num_aux), resident
        acc_ref = refs[3 + 2 * num_aux]          # VMEM (8, mel_cols) f32 accumulator

        i = pl.program_id(0)

        # First tile: zero the vector accumulator and compute the tiny aux losses.
        @pl.when(i == 0)
        def _init():
            acc_ref[...] = jnp.zeros_like(acc_ref)
            if num_aux > 0:
                for k in range(num_aux):
                    p = aux_refs[2 * k][...].astype(jnp.float32)
                    t = aux_refs[2 * k + 1][...].astype(jnp.float32)
                    if log1p_flags[k]:
                        t = jnp.log(t + 1.0)
                    d = p - t
                    out_ref[0, 1 + k] = jnp.sum(d * d)

        # Mel squared-error for this row tile (native dtype in, f32 math).
        p = mel_p_ref[...].astype(jnp.float32)
        t = mel_t_ref[...].astype(jnp.float32)
        d = p - t
        if needs_mask:
            row_ids = jax.lax.broadcasted_iota(jnp.int32, (tile_rows, mel_cols), 0)
            valid = (i * tile_rows + row_ids) < total_rows
            d = jnp.where(valid, d, 0.0)
        # VPU-only accumulation: fold groups of 8 rows into the resident (8, M) scratch.
        acc_ref[...] += jnp.sum((d * d).reshape(-1, 8, mel_cols), axis=0)

        # Last tile: single cross-sublane/lane reduce, store the scalar SSE.
        @pl.when(i == pl.num_programs(0) - 1)
        def _finalize():
            out_ref[0, 0] = jnp.sum(acc_ref[...])

    return kernel


def fastspeech_loss(_target_block_bytes=_TARGET_BLOCK_BYTES, **batch):
    """JAX/Pallas equivalent of FastSpeechLoss.forward(**batch)."""
    mel_p = jnp.asarray(batch["mel_pred"])
    mel_t = jnp.asarray(batch["mel_target"])
    n_mel = mel_p.size

    # Native-layout 2D view: (B, T, M) -> (B*T, M). Free metadata reshape, no
    # pad, no dtype cast, no materialized copy.
    mel_cols = mel_p.shape[-1] if mel_p.ndim > 1 else mel_p.shape[0]
    mel_p2 = mel_p.reshape(-1, mel_cols)
    mel_t2 = mel_t.reshape(-1, mel_cols)
    total_rows = mel_p2.shape[0]

    # Tile sizing: ~_target_block_bytes per mel input block (in its native dtype),
    # rows a multiple of 32 for sublane packing of any dtype.
    itemsize = jnp.dtype(mel_p2.dtype).itemsize
    lane_padded = _round_up(mel_cols, 128)
    rows_budget = max(_ROW_MULT,
                      (_target_block_bytes // (lane_padded * itemsize)) // _ROW_MULT * _ROW_MULT)
    tile_rows = min(rows_budget, _round_up(total_rows, _ROW_MULT))
    num_tiles = pl.cdiv(total_rows, tile_rows)
    needs_mask = (total_rows % tile_rows) != 0

    # Optional aux terms (small (B, T) tensors, fused into the same call).
    aux_terms = []  # (pred, target, log1p_target)
    if "duration_target" in batch:
        aux_terms.append((batch["log_duration_pred"], batch["duration_target"], True))
    if "pitch_target" in batch:
        aux_terms.append((batch["pitch_pred"], batch["pitch_target"], False))
    if "energy_target" in batch:
        aux_terms.append((batch["energy_pred"], batch["energy_target"], False))

    num_aux = len(aux_terms)
    log1p_flags = tuple(t[2] for t in aux_terms)

    aux_arrays = []
    aux_counts = []
    for p, t, _ in aux_terms:
        p = jnp.asarray(p)
        t = jnp.asarray(t)
        p2 = p.reshape(-1, p.shape[-1]) if p.ndim > 1 else p.reshape(1, -1)
        t2 = t.reshape(-1, t.shape[-1]) if t.ndim > 1 else t.reshape(1, -1)
        aux_arrays += [p2, t2]
        aux_counts.append(p.size)

    # --- pallas_call ----------------------------------------------------------
    mel_spec = pl.BlockSpec((tile_rows, mel_cols), lambda i: (i, 0))
    in_specs = [mel_spec, mel_spec]
    for a in aux_arrays:
        # Whole-array block, constant index map -> DMAed into VMEM only once.
        in_specs.append(pl.BlockSpec(a.shape, lambda i: (0, 0)))

    n_terms = 1 + num_aux
    out = pl.pallas_call(
        _make_fused_kernel(num_aux, log1p_flags, tile_rows, total_rows,
                           mel_cols, needs_mask),
        out_shape=jax.ShapeDtypeStruct((1, n_terms), jnp.float32),
        grid=(num_tiles,),
        in_specs=in_specs,
        out_specs=pl.BlockSpec(
            (1, n_terms), lambda i: (0, 0),
            memory_space=pltpu.MemorySpace.SMEM,
        ),
        scratch_shapes=[pltpu.VMEM((8, mel_cols), jnp.float32)],
        compiler_params=pltpu.CompilerParams(
            dimension_semantics=("arbitrary",),
            vmem_limit_bytes=_VMEM_LIMIT_BYTES,
        ),
    )(mel_p2, mel_t2, *aux_arrays)

    # --- scalar glue: means and sum of terms ---------------------------------
    loss = out[0, 0] / float(n_mel)                 # F.mse_loss (mean reduction)
    for k, cnt in enumerate(aux_counts):
        loss = loss + out[0, 1 + k] / float(cnt)
    return loss


def _reference_loss(**batch):
    """Pure-JAX reference mirroring the PyTorch module, for verification."""
    loss = jnp.mean((batch["mel_pred"].astype(jnp.float32)
                     - batch["mel_target"].astype(jnp.float32)) ** 2)
    if "duration_target" in batch:
        ldt = jnp.log(batch["duration_target"].astype(jnp.float32) + 1.0)
        loss += jnp.mean((batch["log_duration_pred"] - ldt) ** 2)
    if "pitch_target" in batch:
        loss += jnp.mean(
            (batch["pitch_pred"] - batch["pitch_target"].astype(jnp.float32)) ** 2
        )
    if "energy_target" in batch:
        loss += jnp.mean(
            (batch["energy_pred"] - batch["energy_target"].astype(jnp.float32)) ** 2
        )
    return loss


if __name__ == "__main__":
    key = jax.random.PRNGKey(0)
    ks = jax.random.split(key, 8)
    B, T, M = 2, 8, 32  # batch, seq frames, mel bins

    batch = dict(
        mel_pred=jax.random.normal(ks[0], (B, T, M), jnp.float32),
        mel_target=jax.random.normal(ks[1], (B, T, M), jnp.float32),
        log_duration_pred=jax.random.normal(ks[2], (B, T), jnp.float32),
        duration_target=jax.random.randint(ks[3], (B, T), 0, 10, jnp.int32),
        pitch_pred=jax.random.normal(ks[4], (B, T), jnp.float32),
        pitch_target=jax.random.normal(ks[5], (B, T), jnp.float32),
        energy_pred=jax.random.normal(ks[6], (B, T), jnp.float32),
        energy_target=jax.random.normal(ks[7], (B, T), jnp.float32),
    )

    # Full batch (mel + duration + pitch + energy), single tile + ragged mask.
    loss = fastspeech_loss(**batch)
    jax.block_until_ready(loss)
    ref = _reference_loss(**batch)
    assert np.allclose(np.asarray(loss), np.asarray(ref), rtol=1e-5, atol=1e-5), (
        float(loss),
        float(ref),
    )

    # Mel-only batch (exercises the no-aux path).
    mel_only = dict(mel_pred=batch["mel_pred"], mel_target=batch["mel_target"])
    loss2 = fastspeech_loss(**mel_only)
    jax.block_until_ready(loss2)
    ref2 = _reference_loss(**mel_only)
    assert np.allclose(np.asarray(loss2), np.asarray(ref2), rtol=1e-5, atol=1e-5), (
        float(loss2),
        float(ref2),
    )

    # Larger mel with a tiny block budget: forces multiple tiles + a ragged last
    # tile, exercising the VMEM accumulator across grid steps.
    k2 = jax.random.split(jax.random.PRNGKey(1), 2)
    big = dict(
        mel_pred=jax.random.normal(k2[0], (2, 100, M), jnp.float32),
        mel_target=jax.random.normal(k2[1], (2, 100, M), jnp.float32),
    )
    loss3 = fastspeech_loss(_target_block_bytes=64 * 1024, **big)
    jax.block_until_ready(loss3)
    ref3 = _reference_loss(**big)
    assert np.allclose(np.asarray(loss3), np.asarray(ref3), rtol=1e-5, atol=1e-5), (
        float(loss3),
        float(ref3),
    )

    print("KERNEL_OK")
</pallas_src>

<mosaic_0001>
module attributes {stable_mosaic.version = 11 : i64} {
  func.func @kernel(%arg0: i32, %arg1: memref<32x32xf32, #tpu.memory_space<vmem>>, %arg2: memref<32x32xf32, #tpu.memory_space<vmem>>, %arg3: memref<2x8xf32, #tpu.memory_space<vmem>>, %arg4: memref<2x8xi32, #tpu.memory_space<vmem>>, %arg5: memref<2x8xf32, #tpu.memory_space<vmem>>, %arg6: memref<2x8xf32, #tpu.memory_space<vmem>>, %arg7: memref<2x8xf32, #tpu.memory_space<vmem>>, %arg8: memref<2x8xf32, #tpu.memory_space<vmem>>, %arg9: memref<1x4xf32, #tpu.memory_space<smem>>, %arg10: memref<8x32xf32, #tpu.memory_space<vmem>>) attributes {dimension_semantics = [#tpu.dimension_semantics<arbitrary>], iteration_bounds = array<i64: 1>, scalar_prefetch = 0 : i64, scratch_operands = 1 : i64, tpu.core_type = #tpu.core_type<tc>, window_params = [{transform_indices = @transform_0, window_bounds = array<i64: 32, 32>}, {transform_indices = @transform_1, window_bounds = array<i64: 32, 32>}, {pipeline_mode = #tpu.pipeline_mode<synchronous>, transform_indices = @transform_2, window_bounds = array<i64: 2, 8>}, {pipeline_mode = #tpu.pipeline_mode<synchronous>, transform_indices = @transform_3, window_bounds = array<i64: 2, 8>}, {pipeline_mode = #tpu.pipeline_mode<synchronous>, transform_indices = @transform_4, window_bounds = array<i64: 2, 8>}, {pipeline_mode = #tpu.pipeline_mode<synchronous>, transform_indices = @transform_5, window_bounds = array<i64: 2, 8>}, {pipeline_mode = #tpu.pipeline_mode<synchronous>, transform_indices = @transform_6, window_bounds = array<i64: 2, 8>}, {pipeline_mode = #tpu.pipeline_mode<synchronous>, transform_indices = @transform_7, window_bounds = array<i64: 2, 8>}, {transform_indices = @transform_8, window_bounds = array<i64: 1, 4>}]} {
    %c0_i32 = arith.constant 0 : i32
    %0 = arith.cmpi eq, %arg0, %c0_i32 : i32
    %1 = arith.extui %0 : i1 to i32
    %c0_i32_0 = arith.constant 0 : i32
    %2 = arith.cmpi ne, %1, %c0_i32_0 : i32
    scf.if %2 {
      %cst_11 = arith.constant 0.000000e+00 : f32
      %23 = vector.broadcast %cst_11 : f32 to vector<8x32xf32>
      %c0_12 = arith.constant 0 : index
      %c0_13 = arith.constant 0 : index
      %24 = vector.load %arg10[%c0_12, %c0_13] : memref<8x32xf32, #tpu.memory_space<vmem>>, vector<8x32xf32>
      tpu.vector_store %arg10[%c0_12, %c0_13], %23 {strides = array<i32>} : memref<8x32xf32, #tpu.memory_space<vmem>>, vector<8x32xf32>,
      %c0_14 = arith.constant 0 : index
      %c0_15 = arith.constant 0 : index
      %25 = vector.load %arg3[%c0_14, %c0_15] : memref<2x8xf32, #tpu.memory_space<vmem>>, vector<2x8xf32>
      %c0_16 = arith.constant 0 : index
      %c0_17 = arith.constant 0 : index
      %26 = vector.load %arg4[%c0_16, %c0_17] : memref<2x8xi32, #tpu.memory_space<vmem>>, vector<2x8xi32>
      %27 = arith.sitofp %26 : vector<2x8xi32> to vector<2x8xf32>
      %cst_18 = arith.constant 1.000000e+00 : f32
      %28 = vector.broadcast %cst_18 : f32 to vector<2x8xf32>
      %29 = arith.addf %27, %28 : vector<2x8xf32>
      %30 = math.log %29 : vector<2x8xf32>
      %31 = arith.subf %25, %30 : vector<2x8xf32>
      %32 = arith.mulf %31, %31 : vector<2x8xf32>
      %33 = vector.shape_cast %32 : vector<2x8xf32> to vector<1x2x8xf32>
      %cst_19 = arith.constant dense<0.000000e+00> : vector<1xf32>
      %34 = vector.multi_reduction <add>, %33, %cst_19 [1, 2] : vector<1x2x8xf32> to vector<1xf32>
      %35 = vector.shape_cast %34 : vector<1xf32> to vector<1x1x1xf32>
      %36 = vector.extract %35[0, 0, 0] : f32 from vector<1x1x1xf32>
      %c0_20 = arith.constant 0 : index
      %c1 = arith.constant 1 : index
      %37 = memref.load %arg9[%c0_20, %c1] : memref<1x4xf32, #tpu.memory_space<smem>>
      memref.store %36, %arg9[%c0_20, %c1] : memref<1x4xf32, #tpu.memory_space<smem>>
      %c0_21 = arith.constant 0 : index
      %c0_22 = arith.constant 0 : index
      %38 = vector.load %arg5[%c0_21, %c0_22] : memref<2x8xf32, #tpu.memory_space<vmem>>, vector<2x8xf32>
      %c0_23 = arith.constant 0 : index
      %c0_24 = arith.constant 0 : index
      %39 = vector.load %arg6[%c0_23, %c0_24] : memref<2x8xf32, #tpu.memory_space<vmem>>, vector<2x8xf32>
      %40 = arith.subf %38, %39 : vector<2x8xf32>
      %41 = arith.mulf %40, %40 : vector<2x8xf32>
      %42 = vector.shape_cast %41 : vector<2x8xf32> to vector<1x2x8xf32>
      %cst_25 = arith.constant dense<0.000000e+00> : vector<1xf32>
      %43 = vector.multi_reduction <add>, %42, %cst_25 [1, 2] : vector<1x2x8xf32> to vector<1xf32>
      %44 = vector.shape_cast %43 : vector<1xf32> to vector<1x1x1xf32>
      %45 = vector.extract %44[0, 0, 0] : f32 from vector<1x1x1xf32>
      %c0_26 = arith.constant 0 : index
      %c2 = arith.constant 2 : index
      %46 = memref.load %arg9[%c0_26, %c2] : memref<1x4xf32, #tpu.memory_space<smem>>
      memref.store %45, %arg9[%c0_26, %c2] : memref<1x4xf32, #tpu.memory_space<smem>>
      %c0_27 = arith.constant 0 : index
      %c0_28 = arith.constant 0 : index
      %47 = vector.load %arg7[%c0_27, %c0_28] : memref<2x8xf32, #tpu.memory_space<vmem>>, vector<2x8xf32>
      %c0_29 = arith.constant 0 : index
      %c0_30 = arith.constant 0 : index
      %48 = vector.load %arg8[%c0_29, %c0_30] : memref<2x8xf32, #tpu.memory_space<vmem>>, vector<2x8xf32>
      %49 = arith.subf %47, %48 : vector<2x8xf32>
      %50 = arith.mulf %49, %49 : vector<2x8xf32>
      %51 = vector.shape_cast %50 : vector<2x8xf32> to vector<1x2x8xf32>
      %cst_31 = arith.constant dense<0.000000e+00> : vector<1xf32>
      %52 = vector.multi_reduction <add>, %51, %cst_31 [1, 2] : vector<1x2x8xf32> to vector<1xf32>
      %53 = vector.shape_cast %52 : vector<1xf32> to vector<1x1x1xf32>
      %54 = vector.extract %53[0, 0, 0] : f32 from vector<1x1x1xf32>
      %c0_32 = arith.constant 0 : index
      %c3 = arith.constant 3 : index
      %55 = memref.load %arg9[%c0_32, %c3] : memref<1x4xf32, #tpu.memory_space<smem>>
      memref.store %54, %arg9[%c0_32, %c3] : memref<1x4xf32, #tpu.memory_space<smem>>
    } else {
    }
    %c0 = arith.constant 0 : index
    %c0_1 = arith.constant 0 : index
    %3 = vector.load %arg1[%c0, %c0_1] : memref<32x32xf32, #tpu.memory_space<vmem>>, vector<32x32xf32>
    %c0_2 = arith.constant 0 : index
    %c0_3 = arith.constant 0 : index
    %4 = vector.load %arg2[%c0_2, %c0_3] : memref<32x32xf32, #tpu.memory_space<vmem>>, vector<32x32xf32>
    %5 = arith.subf %3, %4 : vector<32x32xf32>
    %6 = tpu.iota {dimensions = array<i32: 0>} : vector<32x32xi32>
    %c32_i32 = arith.constant 32 : i32
    %7 = arith.muli %arg0, %c32_i32 : i32
    %8 = vector.broadcast %7 : i32 to vector<32x32xi32>
    %9 = arith.addi %8, %6 : vector<32x32xi32>
    %c16_i32 = arith.constant 16 : i32
    %10 = vector.broadcast %c16_i32 : i32 to vector<32x32xi32>
    %11 = arith.cmpi slt, %9, %10 : vector<32x32xi32>
    %cst = arith.constant 0.000000e+00 : f32
    %12 = vector.broadcast %cst : f32 to vector<32x32xf32>
    %13 = arith.select %11, %5, %12 : vector<32x32xi1>, vector<32x32xf32>
    %c0_4 = arith.constant 0 : index
    %c0_5 = arith.constant 0 : index
    %14 = vector.load %arg10[%c0_4, %c0_5] : memref<8x32xf32, #tpu.memory_space<vmem>>, vector<8x32xf32>
    %15 = arith.mulf %13, %13 : vector<32x32xf32>
    %16 = vector.shape_cast %15 : vector<32x32xf32> to vector<4x8x32xf32>
    %cst_6 = arith.constant dense<0.000000e+00> : vector<8x32xf32>
    %17 = vector.multi_reduction <add>, %16, %cst_6 [0] : vector<4x8x32xf32> to vector<8x32xf32>
    %18 = arith.addf %14, %17 : vector<8x32xf32>
    %c0_7 = arith.constant 0 : index
    %c0_8 = arith.constant 0 : index
    %19 = vector.load %arg10[%c0_7, %c0_8] : memref<8x32xf32, #tpu.memory_space<vmem>>, vector<8x32xf32>
    tpu.vector_store %arg10[%c0_7, %c0_8], %18 {strides = array<i32>} : memref<8x32xf32, #tpu.memory_space<vmem>>, vector<8x32xf32>,
    %c0_i32_9 = arith.constant 0 : i32
    %20 = arith.cmpi eq, %arg0, %c0_i32_9 : i32
    %21 = arith.extui %20 : i1 to i32
    %c0_i32_10 = arith.constant 0 : i32
    %22 = arith.cmpi ne, %21, %c0_i32_10 : i32
    scf.if %22 {
      %c0_11 = arith.constant 0 : index
      %c0_12 = arith.constant 0 : index
      %23 = vector.load %arg10[%c0_11, %c0_12] : memref<8x32xf32, #tpu.memory_space<vmem>>, vector<8x32xf32>
      %24 = vector.shape_cast %23 : vector<8x32xf32> to vector<1x8x32xf32>
      %cst_13 = arith.constant dense<0.000000e+00> : vector<1xf32>
      %25 = vector.multi_reduction <add>, %24, %cst_13 [1, 2] : vector<1x8x32xf32> to vector<1xf32>
      %26 = vector.shape_cast %25 : vector<1xf32> to vector<1x1x1xf32>
      %27 = vector.extract %26[0, 0, 0] : f32 from vector<1x1x1xf32>
      %c0_14 = arith.constant 0 : index
      %c0_15 = arith.constant 0 : index
      %28 = memref.load %arg9[%c0_14, %c0_15] : memref<1x4xf32, #tpu.memory_space<smem>>
      memref.store %27, %arg9[%c0_14, %c0_15] : memref<1x4xf32, #tpu.memory_space<smem>>
    } else {
    }
    return
  }
  func.func @transform_0(%arg0: i32) -> (i32, i32) {
    %c0_i32 = arith.constant 0 : i32
    %c0_i32_0 = arith.constant 0 : i32
    return %arg0, %c0_i32 : i32, i32
  }
  func.func @transform_1(%arg0: i32) -> (i32, i32) {
    %c0_i32 = arith.constant 0 : i32
    %c0_i32_0 = arith.constant 0 : i32
    return %arg0, %c0_i32 : i32, i32
  }
  func.func @transform_2(%arg0: i32) -> (i32, i32) {
    %c0_i32 = arith.constant 0 : i32
    %c0_i32_0 = arith.constant 0 : i32
    %c0_i32_1 = arith.constant 0 : i32
    return %c0_i32, %c0_i32_0 : i32, i32
  }
  func.func @transform_3(%arg0: i32) -> (i32, i32) {
    %c0_i32 = arith.constant 0 : i32
    %c0_i32_0 = arith.constant 0 : i32
    %c0_i32_1 = arith.constant 0 : i32
    return %c0_i32, %c0_i32_0 : i32, i32
  }
  func.func @transform_4(%arg0: i32) -> (i32, i32) {
    %c0_i32 = arith.constant 0 : i32
    %c0_i32_0 = arith.constant 0 : i32
    %c0_i32_1 = arith.constant 0 : i32
    return %c0_i32, %c0_i32_0 : i32, i32
  }
  func.func @transform_5(%arg0: i32) -> (i32, i32) {
    %c0_i32 = arith.constant 0 : i32
    %c0_i32_0 = arith.constant 0 : i32
    %c0_i32_1 = arith.constant 0 : i32
    return %c0_i32, %c0_i32_0 : i32, i32
  }
  func.func @transform_6(%arg0: i32) -> (i32, i32) {
    %c0_i32 = arith.constant 0 : i32
    %c0_i32_0 = arith.constant 0 : i32
    %c0_i32_1 = arith.constant 0 : i32
    return %c0_i32, %c0_i32_0 : i32, i32
  }
  func.func @transform_7(%arg0: i32) -> (i32, i32) {
    %c0_i32 = arith.constant 0 : i32
    %c0_i32_0 = arith.constant 0 : i32
    %c0_i32_1 = arith.constant 0 : i32
    return %c0_i32, %c0_i32_0 : i32, i32
  }
  func.func @transform_8(%arg0: i32) -> (i32, i32) {
    %c0_i32 = arith.constant 0 : i32
    %c0_i32_0 = arith.constant 0 : i32
    %c0_i32_1 = arith.constant 0 : i32
    return %c0_i32, %c0_i32_0 : i32, i32
  }
}

</mosaic_0001>

<llo_original>
// kernel: tpu_custom_call.1
$region0: #{tpu_custom_call.1}
  #allocation0 [shape = 'u32[]', space=smem, size = 0x4, offset = 0x4, fixed_abs, tag = 'smem constant byte address 0x4 - core index']
  #allocation1 [shape = 'u32[144,128]{1,0:T(1,128)}', space=vmem, size = 0x12000, scoped, tag = 'internal scratch']
  #allocation2 [shape = 'f32[8,32]{1,0:T(8,128)}', space=vmem, size = 0x1000, scoped, tag = 'scratch operand']
  %s0 = inlined_call_operand.hbm [shape: f32[16,32], index: 0, kind: input, shape index: {}]
  %s1 = inlined_call_operand.hbm [shape: f32[16,32], index: 1, kind: input, shape index: {}]
  %s2 = inlined_call_operand.vmem [shape: f32[2,8], index: 2, kind: input, shape index: {}]
  %s3 = inlined_call_operand.vmem [shape: s32[2,8], index: 3, kind: input, shape index: {}]
  %s4 = inlined_call_operand.vmem [shape: f32[2,8], index: 4, kind: input, shape index: {}]
  %s5 = inlined_call_operand.vmem [shape: f32[2,8], index: 5, kind: input, shape index: {}]
  %s6 = inlined_call_operand.vmem [shape: f32[2,8], index: 6, kind: input, shape index: {}]
  %s7 = inlined_call_operand.vmem [shape: f32[2,8], index: 7, kind: input, shape index: {}]
  %s8 = inlined_call_operand.hbm [shape: f32[1,4], index: 8, kind: output, shape index: {}]
  %s9 = sld [smem:[#allocation0]]
  $region58: #{tpu_custom_call.1} parent=0
    _
  %s11 = ssub.s32 1, %s9
  %s12 = scalar_select 0, %s11, %s9
  $region1: #{tpu_custom_call.1} parent=0
    #allocation3 [shape = 'u8[16384]{0}', space=vmem, size = 0x4000, scoped, tag = 'input window, operand 0, single buffered']
    #allocation4 [shape = 's32[1]{0}', space=sflag, size = 0x4, scoped, tag = 'scoped memory for tpu_custom_call.1']
    #allocation5 [shape = 's32[1]{0}', space=sflag, size = 0x4, scoped, tag = 'scoped memory for tpu_custom_call.1']
    #allocation6 [shape = 'u8[16384]{0}', space=vmem, size = 0x4000, scoped, tag = 'input window, operand 1, single buffered']
    #allocation7 [shape = 's32[1]{0}', space=sflag, size = 0x4, scoped, tag = 'scoped memory for tpu_custom_call.1']
    #allocation8 [shape = 'u8[512]{0}', space=smem, size = 0x200, scoped, tag = 'output window, operand 0, single buffered']
    %13 = vsyncpa [#allocation4], 0
    %14 = vsyncpa [#allocation7], 0
    %15 = vsyncpa [#allocation5], 0
    // Predicated region
    $region2: #{tpu_custom_call.1} parent=1 // pred_check
      _
    $region3: #{tpu_custom_call.1} parent=1 // pred_check_branch
      %17 = sbr.rel (0) target = $region5
    $region4: #{tpu_custom_call.1} parent=1 // pred_region
      %s19 = ssub.s32 512, 256
      %20 = vsyncadd [#allocation4], %s19
      %s21 = sshll.u32 [#allocation3], 4
      %s22 = int_to_ptr.vmem [resolvable:$true] %s21
      %27 = dma.hbm_to_vmem [thread:$0]  %s0, 256, %s22, [#allocation4], 128, 128, 8
    $region5: #{tpu_custom_call.1} parent=1 // pred_fallthru
      _
    // Predicated region
    $region6: #{tpu_custom_call.1} parent=1 // pred_check
      _
    $region7: #{tpu_custom_call.1} parent=1 // pred_check_branch
      %29 = sbr.rel (0) target = $region9
    $region8: #{tpu_custom_call.1} parent=1 // pred_region
      %s31 = ssub.s32 512, 256
      %32 = vsyncadd [#allocation7], %s31
      %s33 = sshll.u32 [#allocation6], 4
      %s34 = int_to_ptr.vmem [resolvable:$true] %s33
      %39 = dma.hbm_to_vmem [thread:$0]  %s1, 256, %s34, [#allocation7], 128, 128, 8
    $region9: #{tpu_custom_call.1} parent=1 // pred_fallthru
      _
    // Predicated region
    $region10: #{tpu_custom_call.1} parent=1 // pred_check
      _
    $region11: #{tpu_custom_call.1} parent=1 // pred_check_branch
      %41 = sbr.rel (0) target = $region13
    $region12: #{tpu_custom_call.1} parent=1 // pred_region
      _
    $region13: #{tpu_custom_call.1} parent=1 // pred_fallthru
      _
    // Predicated region
    $region14: #{tpu_custom_call.1} parent=1 // pred_check
      _
    $region15: #{tpu_custom_call.1} parent=1 // pred_check_branch
      %43 = sbr.rel (0) target = $region17
    $region16: #{tpu_custom_call.1} parent=1 // pred_region
      _
    $region17: #{tpu_custom_call.1} parent=1 // pred_fallthru
      _
    // Predicated region
    $region18: #{tpu_custom_call.1} parent=1 // pred_check
      _
    $region19: #{tpu_custom_call.1} parent=1 // pred_check_branch
      %45 = sbr.rel (0) target = $region21
    $region20: #{tpu_custom_call.1} parent=1 // pred_region
      _
    $region21: #{tpu_custom_call.1} parent=1 // pred_fallthru
      _
    // Predicated region
    $region22: #{tpu_custom_call.1} parent=1 // pred_check
      _
    $region23: #{tpu_custom_call.1} parent=1 // pred_check_branch
      %47 = sbr.rel (0) target = $region25
    $region24: #{tpu_custom_call.1} parent=1 // pred_region
      _
    $region25: #{tpu_custom_call.1} parent=1 // pred_fallthru
      _
    // Predicated region
    $region26: #{tpu_custom_call.1} parent=1 // pred_check
      _
    $region27: #{tpu_custom_call.1} parent=1 // pred_check_branch
      %49 = sbr.rel (0) target = $region29
    $region28: #{tpu_custom_call.1} parent=1 // pred_region
      _
    $region29: #{tpu_custom_call.1} parent=1 // pred_fallthru
      _
    // Predicated region
    $region30: #{tpu_custom_call.1} parent=1 // pred_check
      _
    $region31: #{tpu_custom_call.1} parent=1 // pred_check_branch
      %51 = sbr.rel (0) target = $region33
    $region32: #{tpu_custom_call.1} parent=1 // pred_region
      _
    $region33: #{tpu_custom_call.1} parent=1 // pred_fallthru
      _
    // Predicated region
    $region34: #{tpu_custom_call.1} parent=1 // pred_check
      _
    $region35: #{tpu_custom_call.1} parent=1 // pred_check_branch
      %53 = sbr.rel (0) target = $region37
    $region36: #{tpu_custom_call.1} parent=1 // pred_region
      %54 = dma.done [#allocation4], 512
    $region37: #{tpu_custom_call.1} parent=1 // pred_fallthru
      _
    // Predicated region
    $region38: #{tpu_custom_call.1} parent=1 // pred_check
      _
    $region39: #{tpu_custom_call.1} parent=1 // pred_check_branch
      %56 = sbr.rel (0) target = $region41
    $region40: #{tpu_custom_call.1} parent=1 // pred_region
      %57 = dma.done [#allocation7], 512
    $region41: #{tpu_custom_call.1} parent=1 // pred_fallthru
      _
    %p58 = scmp.eq.s32.totalorder 0, 0
    // Predicated region
    $region42: #{tpu_custom_call.1} parent=1 // pred_check
      %p59 = pneg %p58
    $region43: #{tpu_custom_call.1} parent=1 // pred_check_branch
      %61 = sbr.rel (%p59) target = $region45
    $region44: #{tpu_custom_call.1} parent=1 // pred_region
      %vm62 = vcmask 261120
      %63 = vst.msk [vmem:[#allocation2] sm:$0xff] %vm62, 0.0
      %v64 = vld [vmem:[%s2] sm:$0x3]
      %v65 = vld [vmem:[%s3] sm:$0x3]
      %v66 = vcvt.s32.f32 %v65
      %v67 = vadd.f32 %v66, 1.0
      %v68 = vlog2.pop %v67
      %v69 = vmul.f32 %v68, 0.6931472
      %v70 = vsub.f32 %v64, %v69
      %v71 = vmul.f32 %v70, %v70
      %vm72 = vcmask 58368
      %v73 = vsel %vm72, %v71, 0.0
      %74 = vadd.xlane.f32.xlu0 %v73
      %v75 = vpop.xlane.xlu0 %74
      %v76 = vrot.slane %v75, 4
      %v77 = vadd.f32 %v75, %v76
      %v78 = vrot.slane %v77, 2
      %v79 = vadd.f32 %v77, %v78
      %v80 = vrot.slane %v79, 1
      %v81 = vadd.f32 %v79, %v80
      %s82 = vtos %v81
      %s83 = scalar_lea.smem [#allocation8], 1
      %84 = sst [smem:[%s83]] %s82
      %v85 = vld [vmem:[%s4] sm:$0x3]
      %v86 = vld [vmem:[%s5] sm:$0x3]
      %v87 = vsub.f32 %v85, %v86
      %v88 = vmul.f32 %v87, %v87
      %v89 = vsel %vm72, %v88, 0.0
      %90 = vadd.xlane.f32.xlu0 %v89
      %v91 = vpop.xlane.xlu0 %90
      %v92 = vrot.slane %v91, 4
      %v93 = vadd.f32 %v91, %v92
      %v94 = vrot.slane %v93, 2
      %v95 = vadd.f32 %v93, %v94
      %v96 = vrot.slane %v95, 1
      %v97 = vadd.f32 %v95, %v96
      %s98 = vtos %v97
      %s99 = scalar_lea.smem [#allocation8], 2
      %100 = sst [smem:[%s99]] %s98
      %v101 = vld [vmem:[%s6] sm:$0x3]
      %v102 = vld [vmem:[%s7] sm:$0x3]
      %v103 = vsub.f32 %v101, %v102
      %v104 = vmul.f32 %v103, %v103
      %v105 = vsel %vm72, %v104, 0.0
      %106 = vadd.xlane.f32.xlu0 %v105
      %v107 = vpop.xlane.xlu0 %106
      %v108 = vrot.slane %v107, 4
      %v109 = vadd.f32 %v107, %v108
      %v110 = vrot.slane %v109, 2
      %v111 = vadd.f32 %v109, %v110
      %v112 = vrot.slane %v111, 1
      %v113 = vadd.f32 %v111, %v112
      %s114 = vtos %v113
      %s115 = scalar_lea.smem [#allocation8], 3
      %116 = sst [smem:[%s115]] %s114
    $region45: #{tpu_custom_call.1} parent=1 // pred_fallthru
      _
    %v117 = vld [vmem:[#allocation3] sm:$0xff]
    %v118 = vld [vmem:[#allocation3 + $0x8] sm:$0xff]
    %v119 = vld [vmem:[#allocation3 + $0x10] sm:$0xff]
    %v120 = vld [vmem:[#allocation3 + $0x18] sm:$0xff]
    %v121 = vld [vmem:[#allocation6] sm:$0xff]
    %v122 = vld [vmem:[#allocation6 + $0x8] sm:$0xff]
    %v123 = vld [vmem:[#allocation6 + $0x10] sm:$0xff]
    %v124 = vld [vmem:[#allocation6 + $0x18] sm:$0xff]
    %v125 = vsub.f32 %v117, %v121
    %v126 = vsub.f32 %v118, %v122
    %v127 = vsub.f32 %v119, %v123
    %v128 = vsub.f32 %v120, %v124
    %v129 = vlaneseq
    %v130 = vshrl.u32 %v129, 7
    %v131 = vadd.s32 %v130, 8
    %v132 = vadd.s32 %v130, 16
    %v133 = vadd.s32 %v130, 24
    %s134 = smul.u32 0, 32
    %v135 = vstv %s134
    %v136 = vadd.s32 %v135, %v130
    %v137 = vadd.s32 %v135, %v131
    %v138 = vadd.s32 %v135, %v132
    %v139 = vadd.s32 %v135, %v133
    %vm140 = vcmp.lt.s32.totalorder %v136, 16
    %vm141 = vcmp.lt.s32.totalorder %v137, 16
    %vm142 = vcmp.lt.s32.totalorder %v138, 16
    %vm143 = vcmp.lt.s32.totalorder %v139, 16
    %v144 = vsel %vm140, %v125, 0.0
    %v145 = vsel %vm141, %v126, 0.0
    %v146 = vsel %vm142, %v127, 0.0
    %v147 = vsel %vm143, %v128, 0.0
    %v148 = vld [vmem:[#allocation2] sm:$0xff]
    %v149 = vmul.f32 %v144, %v144
    %v150 = vmul.f32 %v145, %v145
    %v151 = vmul.f32 %v146, %v146
    %v152 = vmul.f32 %v147, %v147
    %vm153 = vcmask 261120
    %v154 = vsel %vm153, %v149, 0.0
    %v155 = vsel %vm153, %v150, 0.0
    %v156 = vadd.f32 %v154, %v155
    %v157 = vsel %vm153, %v151, 0.0
    %v158 = vadd.f32 %v156, %v157
    %v159 = vsel %vm153, %v152, 0.0
    %v160 = vadd.f32 %v158, %v159
    %v161 = vadd.f32 %v148, %v160
    %162 = vst.msk [vmem:[#allocation2] sm:$0xff] %vm153, %v161
    // Predicated region
    $region46: #{tpu_custom_call.1} parent=1 // pred_check
      %p163 = pneg %p58
    $region47: #{tpu_custom_call.1} parent=1 // pred_check_branch
      %165 = sbr.rel (%p163) target = $region49
    $region48: #{tpu_custom_call.1} parent=1 // pred_region
      %v166 = vld [vmem:[#allocation2] sm:$0xff]
      %v167 = vsel %vm153, %v166, 0.0
      %168 = vadd.xlane.f32.xlu0 %v167
      %v169 = vpop.xlane.xlu0 %168
      %v170 = vrot.slane %v169, 4
      %v171 = vadd.f32 %v169, %v170
      %v172 = vrot.slane %v171, 2
      %v173 = vadd.f32 %v171, %v172
      %v174 = vrot.slane %v173, 1
      %v175 = vadd.f32 %v173, %v174
      %s176 = vtos %v175
      %s177 = scalar_lea.smem [#allocation8], 0
      %178 = sst [smem:[%s177]] %s176
    $region49: #{tpu_custom_call.1} parent=1 // pred_fallthru
      _
    // Predicated region
    $region50: #{tpu_custom_call.1} parent=1 // pred_check
      _
    $region51: #{tpu_custom_call.1} parent=1 // pred_check_branch
      %180 = sbr.rel (0) target = $region53
    $region52: #{tpu_custom_call.1} parent=1 // pred_region
      %s182 = ssub.s32 16, 16
      %183 = vsyncadd [#allocation5], %s182
      %186 = dma.smem_to_hbm [#allocation8], 16, %s8, [#allocation5]
    $region53: #{tpu_custom_call.1} parent=1 // pred_fallthru
      _
    // Predicated region
    $region54: #{tpu_custom_call.1} parent=1 // pred_check
      _
    $region55: #{tpu_custom_call.1} parent=1 // pred_check_branch
      %188 = sbr.rel (0) target = $region57
    $region56: #{tpu_custom_call.1} parent=1 // pred_region
      %189 = dma.done [#allocation5], 16
    $region57: #{tpu_custom_call.1} parent=1 // pred_fallthru
      _
    %190 = sfence
    %191 = vsyncpa [#allocation4], 1
    %192 = vsyncpa [#allocation7], 1
    %193 = vsyncpa [#allocation5], 1

</llo_original>
